<compile_context>
chip_gen: v7x
topology: tpu7x:2x2x1
jax: 0.10.0
libtpu: 0.0.40
codegen_flags: <defaults>
</compile_context>

<pallas_src>
import functools

import jax
import jax.numpy as jnp
from jax.experimental import pallas as pl
from jax.experimental.pallas import tpu as pltpu


# ---------------------------------------------------------------------------
# Kernels
# ---------------------------------------------------------------------------

def _patch_embed_kernel(patches_ref, w_ref, b_ref, out_ref):
    # patches_ref: (tm, K) bf16   w_ref: (K, E) bf16   b_ref: (1, E) f32   out_ref: (tm, E) bf16
    acc = jnp.dot(patches_ref[...], w_ref[...], preferred_element_type=jnp.float32)
    acc = acc + b_ref[...]                                   # broadcast bias over rows
    out_ref[...] = acc.astype(out_ref.dtype)


def _patch_embed_mask_kernel(patches_ref, w_ref, b_ref, mask_ref, mtok_ref, out_ref):
    # mask_ref: (tm, 1) f32 in {0., 1.}   mtok_ref: (1, E) f32
    acc = jnp.dot(patches_ref[...], w_ref[...], preferred_element_type=jnp.float32)
    acc = acc + b_ref[...]
    m = mask_ref[...]
    # lerp form: acc*(1-m) + mtok*m  ==  acc + m*(mtok - acc); one fewer multiply/temporary.
    acc = acc + m * (mtok_ref[...] - acc)
    out_ref[...] = acc.astype(out_ref.dtype)


# ---------------------------------------------------------------------------
# pallas_call wrapper
# ---------------------------------------------------------------------------

def _round_up(x, m):
    return ((x + m - 1) // m) * m


def _choose_tm(M):
    """Row-tile: big enough to fill the MXU / amortize per-step overhead, >=2 grid steps.

    v6e/v7x: 1024-row tiles for large M (bf16 in/out keeps the working set ~<16 MiB even for
    ViT-g, within the explicit vmem_limit below).  v5e is already near the MXU roofline for
    this intensity, and the explicit vmem_limit (>= 32 MiB < 128 MiB physical) keeps the same
    tile choices legal there too.
    """
    if M >= 4096:
        return 1024
    if M >= 2048:
        return 512
    if M >= 512:
        return 256
    if M >= 256:
        return 128
    # Small problems: sublane-aligned, at least two grid steps when M permits.
    return max(8, min(128, _round_up(M // 2 if M >= 16 else M, 8)))


def _resident_spec(shape):
    """Constant-index operand: single pipeline buffer (no point double-buffering it)."""
    return pl.BlockSpec(shape, lambda i: (0, 0), pipeline_mode=pl.Buffered(1))


def _patch_embed_pallas(patches, w_mat, bias, mask, mask_token, *, tm, out_dtype):
    """patches: (M_pad, K) bf16, w_mat: (K, E) bf16, bias: (1, E) f32,
    mask: (M_pad, 1) f32 or None, mask_token: (1, E) f32 or None."""
    M, K = patches.shape
    E = w_mat.shape[1]
    assert M % tm == 0  # caller pads M up to a multiple of tm
    grid = (M // tm,)

    # Explicit scoped-VMEM limit derived from the actual tile footprint (double-buffered
    # patches + output tiles, single-buffered weight) + headroom; clamped to stay below
    # every generation's physical VMEM (v7x: 64 MiB/TC).
    in_sz = jnp.dtype(patches.dtype).itemsize
    out_sz = jnp.dtype(out_dtype).itemsize
    footprint = (2 * tm * K * in_sz            # patches double buffer
                 + 2 * tm * E * out_sz         # output double buffer
                 + K * E * jnp.dtype(w_mat.dtype).itemsize   # resident weight (1 buffer)
                 + 2 * E * 4 + 2 * tm * 4)     # bias / mask_token / mask
    vmem_limit = int(min(max(footprint + (8 << 20), 32 << 20), 48 << 20))

    common = dict(
        out_shape=jax.ShapeDtypeStruct((M, E), out_dtype),
        compiler_params=pltpu.CompilerParams(
            dimension_semantics=("parallel",),
            vmem_limit_bytes=vmem_limit),
    )

    # NOTE(v7x): once tm is finalized for a given config, a Buffered(3) sweep on the patches
    # in_spec / out_spec can hide DMA-issue latency at the short per-step times of 3.2 TB/s HBM.
    patch_spec = pl.BlockSpec((tm, K), lambda i: (i, 0))
    out_spec = pl.BlockSpec((tm, E), lambda i: (i, 0))

    if mask is None:
        return pl.pallas_call(
            _patch_embed_kernel,
            grid_spec=pltpu.PrefetchScalarGridSpec(
                num_scalar_prefetch=0,
                grid=grid,
                in_specs=[
                    patch_spec,
                    _resident_spec((K, E)),    # resident weight
                    _resident_spec((1, E)),    # resident bias
                ],
                out_specs=out_spec,
            ),
            **common,
        )(patches, w_mat, bias)

    return pl.pallas_call(
        _patch_embed_mask_kernel,
        grid_spec=pltpu.PrefetchScalarGridSpec(
            num_scalar_prefetch=0,
            grid=grid,
            in_specs=[
                patch_spec,
                _resident_spec((K, E)),        # resident weight
                _resident_spec((1, E)),        # resident bias
                pl.BlockSpec((tm, 1), lambda i: (i, 0)),
                _resident_spec((1, E)),        # resident mask token
            ],
            out_specs=out_spec,
        ),
        **common,
    )(patches, w_mat, bias, mask, mask_token)


# ---------------------------------------------------------------------------
# Jitted forward (patchify / pad / slice / cls-concat fuse on the XLA side)
# ---------------------------------------------------------------------------

@functools.partial(jax.jit, static_argnames=("patch_size", "compute_dtype", "out_dtype"))
def _vision_embedding_forward(x, w_mat, bias, mask_token, cls_token, masked_position,
                              *, patch_size, compute_dtype, out_dtype):
    B, C, H, W = x.shape
    p = patch_size
    Hp, Wp = H // p, W // p
    N = Hp * Wp
    K, E = w_mat.shape
    M = B * N
    assert K == C * p * p

    # Cast to the compute dtype BEFORE patchify so the materialized patches buffer and its
    # re-read by the kernel move bf16, not f32 (also handles integer image inputs).
    # TODO(synk): move patch extraction into the kernel via a BlockSpec on x (grid over
    #             (B, row-groups)) to remove this HBM materialization entirely.
    x = x.astype(compute_dtype)
    patches = x.reshape(B, C, Hp, p, Wp, p).transpose(0, 2, 4, 1, 3, 5).reshape(M, K)

    tm = _choose_tm(M)
    M_pad = _round_up(M, tm)
    if M_pad != M:
        patches = jnp.pad(patches, ((0, M_pad - M), (0, 0)))

    if masked_position is not None:
        mask = masked_position.reshape(M, 1).astype(jnp.float32)
        if M_pad != M:
            mask = jnp.pad(mask, ((0, M_pad - M), (0, 0)))
    else:
        mask = None
        mask_token = None

    # Kernel emits compute_dtype (bf16) — halves output HBM bytes & output VMEM vs f32.
    out = _patch_embed_pallas(patches, w_mat, bias, mask, mask_token,
                              tm=tm, out_dtype=compute_dtype)
    out = out[:M].reshape(B, N, E)

    if cls_token is not None:
        # TODO(synk): fuse the cls prepend into the kernel output (per-batch full-dim output
        #             blocks over a (B, N+1, E) buffer) to drop this extra HBM pass.
        cls = jnp.broadcast_to(cls_token.reshape(1, 1, E).astype(out.dtype), (B, 1, E))
        out = jnp.concatenate([cls, out], axis=1)

    return out.astype(out_dtype)


# ---------------------------------------------------------------------------
# Module wrapper
# ---------------------------------------------------------------------------

class VisionEmbeddingPallas:
    """JAX/Pallas port of the PyTorch VisionEmbedding module."""

    def __init__(self, img_size=224, patch_size=16, in_chans=3, embed_dim=768,
                 contain_mask_token=False, prepend_cls_token=False, key=None,
                 compute_dtype=jnp.bfloat16, out_dtype=None):
        self.img_size = (img_size, img_size)
        self.patch_size = (patch_size, patch_size)
        self.patch_shape = (img_size // patch_size, img_size // patch_size)
        self.num_patches = self.patch_shape[0] * self.patch_shape[1]
        self.in_chans = in_chans
        self.embed_dim = embed_dim
        self.compute_dtype = compute_dtype
        # Explicit output dtype (no longer inherited from x.dtype).
        self.out_dtype = compute_dtype if out_dtype is None else out_dtype

        if key is None:
            key = jax.random.PRNGKey(0)
        kw, kb, km, kc = jax.random.split(key, 4)
        p = patch_size
        K = in_chans * p * p
        # Conv2d(in_chans, embed_dim, kernel=patch, stride=patch) weights, OIHW (f32 master).
        self.proj_weight = (jax.random.normal(kw, (embed_dim, in_chans, p, p),
                                              dtype=jnp.float32) * 0.02)
        self.proj_bias = jax.random.normal(kb, (embed_dim,), dtype=jnp.float32) * 0.02
        self.mask_token = (jax.random.normal(km, (1, 1, embed_dim), dtype=jnp.float32) * 0.02
                           if contain_mask_token else None)
        self.cls_token = (jax.random.normal(kc, (1, 1, embed_dim), dtype=jnp.float32) * 0.02
                          if prepend_cls_token else None)

        # Kernel-ready operands, prepared once (no per-call transpose/cast pass):
        #   w_mat: (K, E) bf16 lane-friendly layout, bias/mask_token: (1, E) f32.
        self.w_mat = self.proj_weight.reshape(embed_dim, K).T.astype(compute_dtype)
        self.bias2d = self.proj_bias.reshape(1, embed_dim).astype(jnp.float32)
        self.mask_token2d = (self.mask_token.reshape(1, embed_dim).astype(jnp.float32)
                             if contain_mask_token else None)

    def num_position_embeddings(self):
        return self.num_patches if self.cls_token is None else self.num_patches + 1

    def __call__(self, x, masked_position=None):
        B, C, H, W = x.shape
        assert H == self.img_size[0] and W == self.img_size[1]
        if masked_position is not None:
            assert self.mask_token is not None
            mtok = self.mask_token2d
        else:
            mtok = None
        return _vision_embedding_forward(
            x, self.w_mat, self.bias2d, mtok, self.cls_token, masked_position,
            patch_size=self.patch_size[0], compute_dtype=self.compute_dtype,
            out_dtype=self.out_dtype)


# ---------------------------------------------------------------------------
# Reference + self-test
# ---------------------------------------------------------------------------

def _reference(module, x, masked_position):
    """Pure-JAX reference mirroring the PyTorch forward, with the same bf16 input rounding
    and final output-dtype rounding as the kernel (f32 accumulation via precision=HIGHEST)."""
    B = x.shape[0]
    p = module.patch_size[0]
    E = module.embed_dim
    N = module.num_patches
    x_r = x.astype(module.compute_dtype).astype(jnp.float32)
    w_r = module.proj_weight.astype(module.compute_dtype).astype(jnp.float32)
    conv = jax.lax.conv_general_dilated(
        x_r, w_r, window_strides=(p, p), padding="VALID",
        dimension_numbers=("NCHW", "OIHW", "NCHW"),
        precision=jax.lax.Precision.HIGHEST)                 # (B, E, Hp, Wp)
    out = conv.reshape(B, E, N).transpose(0, 2, 1) + module.proj_bias[None, None, :]
    if masked_position is not None:
        w = masked_position.astype(jnp.float32)[..., None]
        out = out * (1.0 - w) + module.mask_token * w
    out = out.astype(module.out_dtype)
    if module.cls_token is not None:
        cls = jnp.broadcast_to(module.cls_token.astype(module.out_dtype), (B, 1, E))
        out = jnp.concatenate([cls, out], axis=1)
    return out


if __name__ == "__main__":
    key = jax.random.PRNGKey(0)
    k_x, k_m, k_params = jax.random.split(key, 3)

    # Small shapes: batch=2, in_chans=4, img=16, patch=4 -> 16 patches, embed_dim=32.
    B, C, IMG, P, E = 2, 4, 16, 4, 32
    module = VisionEmbeddingPallas(img_size=IMG, patch_size=P, in_chans=C, embed_dim=E,
                                   contain_mask_token=True, prepend_cls_token=True,
                                   key=k_params)

    x = jax.random.normal(k_x, (B, C, IMG, IMG), dtype=jnp.float32)
    masked_position = jax.random.bernoulli(k_m, 0.3, (B, module.num_patches)).astype(jnp.int32)

    def _check(got, want):
        g = got.astype(jnp.float32)
        w = want.astype(jnp.float32)
        err = float(jnp.max(jnp.abs(g - w)))
        assert jnp.allclose(g, w, atol=1e-2, rtol=1e-2), err

    # Masked path.
    out = jax.block_until_ready(module(x, masked_position))
    ref = jax.block_until_ready(_reference(module, x, masked_position))
    assert out.shape == (B, module.num_patches + 1, E), out.shape
    assert out.dtype == module.out_dtype, out.dtype
    _check(out, ref)

    # Unmasked path (no-mask kernel variant).
    out2 = jax.block_until_ready(module(x, None))
    ref2 = jax.block_until_ready(_reference(module, x, None))
    assert out2.shape == (B, module.num_patches + 1, E), out2.shape
    assert out2.dtype == module.out_dtype, out2.dtype
    _check(out2, ref2)

    print("KERNEL_OK")
</pallas_src>

<mosaic_0001>
module attributes {stable_mosaic.version = 11 : i64} {
  func.func @_patch_embed_mask_kernel(%arg0: i32, %arg1: memref<16x64xbf16, #tpu.memory_space<vmem>>, %arg2: memref<64x32xbf16, #tpu.memory_space<vmem>>, %arg3: memref<1x32xf32, #tpu.memory_space<vmem>>, %arg4: memref<16x1xf32, #tpu.memory_space<vmem>>, %arg5: memref<1x32xf32, #tpu.memory_space<vmem>>, %arg6: memref<16x32xbf16, #tpu.memory_space<vmem>>) attributes {dimension_semantics = [#tpu.dimension_semantics<parallel>], iteration_bounds = array<i64: 2>, scalar_prefetch = 0 : i64, scratch_operands = 0 : i64, tpu.core_type = #tpu.core_type<tc>, window_params = [{transform_indices = @transform_0, window_bounds = array<i64: 16, 64>}, {pipeline_mode = #tpu.pipeline_mode<synchronous>, transform_indices = @transform_1, window_bounds = array<i64: 64, 32>}, {pipeline_mode = #tpu.pipeline_mode<synchronous>, transform_indices = @transform_2, window_bounds = array<i64: 1, 32>}, {transform_indices = @transform_3, window_bounds = array<i64: 16, 1>}, {pipeline_mode = #tpu.pipeline_mode<synchronous>, transform_indices = @transform_4, window_bounds = array<i64: 1, 32>}, {transform_indices = @transform_5, window_bounds = array<i64: 16, 32>}]} {
    %c0 = arith.constant 0 : index
    %c0_0 = arith.constant 0 : index
    %0 = vector.load %arg1[%c0, %c0_0] : memref<16x64xbf16, #tpu.memory_space<vmem>>, vector<16x64xbf16>
    %c0_1 = arith.constant 0 : index
    %c0_2 = arith.constant 0 : index
    %1 = vector.load %arg2[%c0_1, %c0_2] : memref<64x32xbf16, #tpu.memory_space<vmem>>, vector<64x32xbf16>
    %cst = arith.constant dense<0.000000e+00> : vector<16x32xf32>
    %2 = tpu.matmul %0, %1, %cst {dimension_numbers = #tpu.dot_dimension_numbers<[1], [0], [0], [1], [0, 0, 1, 1], [], []>} : vector<16x64xbf16>, vector<64x32xbf16>, vector<16x32xf32> -> vector<16x32xf32>
    %c0_3 = arith.constant 0 : index
    %c0_4 = arith.constant 0 : index
    %3 = vector.load %arg3[%c0_3, %c0_4] : memref<1x32xf32, #tpu.memory_space<vmem>>, vector<1x32xf32>
    %4 = vector.broadcast %3 : vector<1x32xf32> to vector<16x32xf32>
    %5 = arith.addf %2, %4 : vector<16x32xf32>
    %c0_5 = arith.constant 0 : index
    %c0_6 = arith.constant 0 : index
    %6 = vector.load %arg4[%c0_5, %c0_6] : memref<16x1xf32, #tpu.memory_space<vmem>>, vector<16x1xf32>
    %c0_7 = arith.constant 0 : index
    %c0_8 = arith.constant 0 : index
    %7 = vector.load %arg5[%c0_7, %c0_8] : memref<1x32xf32, #tpu.memory_space<vmem>>, vector<1x32xf32>
    %8 = vector.broadcast %7 : vector<1x32xf32> to vector<16x32xf32>
    %9 = arith.subf %8, %5 : vector<16x32xf32>
    %10 = vector.broadcast %6 : vector<16x1xf32> to vector<16x32xf32>
    %11 = arith.mulf %10, %9 : vector<16x32xf32>
    %12 = arith.addf %5, %11 : vector<16x32xf32>
    %13 = arith.truncf %12 : vector<16x32xf32> to vector<16x32xbf16>
    %c0_9 = arith.constant 0 : index
    %c0_10 = arith.constant 0 : index
    %14 = vector.load %arg6[%c0_9, %c0_10] : memref<16x32xbf16, #tpu.memory_space<vmem>>, vector<16x32xbf16>
    tpu.vector_store %arg6[%c0_9, %c0_10], %13 {strides = array<i32>} : memref<16x32xbf16, #tpu.memory_space<vmem>>, vector<16x32xbf16>,
    return
  }
  func.func @transform_0(%arg0: i32) -> (i32, i32) {
    %c0_i32 = arith.constant 0 : i32
    %c0_i32_0 = arith.constant 0 : i32
    return %arg0, %c0_i32 : i32, i32
  }
  func.func @transform_1(%arg0: i32) -> (i32, i32) {
    %c0_i32 = arith.constant 0 : i32
    %c0_i32_0 = arith.constant 0 : i32
    %c0_i32_1 = arith.constant 0 : i32
    return %c0_i32, %c0_i32_0 : i32, i32
  }
  func.func @transform_2(%arg0: i32) -> (i32, i32) {
    %c0_i32 = arith.constant 0 : i32
    %c0_i32_0 = arith.constant 0 : i32
    %c0_i32_1 = arith.constant 0 : i32
    return %c0_i32, %c0_i32_0 : i32, i32
  }
  func.func @transform_3(%arg0: i32) -> (i32, i32) {
    %c0_i32 = arith.constant 0 : i32
    %c0_i32_0 = arith.constant 0 : i32
    return %arg0, %c0_i32 : i32, i32
  }
  func.func @transform_4(%arg0: i32) -> (i32, i32) {
    %c0_i32 = arith.constant 0 : i32
    %c0_i32_0 = arith.constant 0 : i32
    %c0_i32_1 = arith.constant 0 : i32
    return %c0_i32, %c0_i32_0 : i32, i32
  }
  func.func @transform_5(%arg0: i32) -> (i32, i32) {
    %c0_i32 = arith.constant 0 : i32
    %c0_i32_0 = arith.constant 0 : i32
    return %arg0, %c0_i32 : i32, i32
  }
}

</mosaic_0001>

<llo_original>
// kernel: _vision_embedding_forward.1
$region0: #{_vision_embedding_forward.1}
  #allocation0 [shape = 'u32[]', space=smem, size = 0x4, offset = 0x4, fixed_abs, tag = 'smem constant byte address 0x4 - core index']
  #allocation1 [shape = 'u32[144,128]{1,0:T(1,128)}', space=vmem, size = 0x12000, scoped, tag = 'internal scratch']
  %s0 = inlined_call_operand.vmem [shape: bf16[32,64], index: 0, kind: input, shape index: {}]
  %s1 = inlined_call_operand.vmem [shape: bf16[64,32], index: 1, kind: input, shape index: {}]
  %s2 = inlined_call_operand.vmem [shape: f32[1,32], index: 2, kind: input, shape index: {}]
  %s3 = inlined_call_operand.vmem [shape: f32[32,1], index: 3, kind: input, shape index: {}]
  %s4 = inlined_call_operand.vmem [shape: f32[1,32], index: 4, kind: input, shape index: {}]
  %s5 = inlined_call_operand.vmem [shape: bf16[32,32], index: 5, kind: output, shape index: {}]
  %s6 = sld [smem:[#allocation0]]
  $region53: #{_vision_embedding_forward.1} parent=0
    _
  %s8 = ssub.s32 1, %s6
  %s9 = scalar_select 0, %s8, %s6
  loop: start=0, step=1, limit=4
  $region2: #{_vision_embedding_forward.1} parent=0 // loop_pre_header
    _
  $region3: #{_vision_embedding_forward.1} parent=0 // loop_header
    %s11 = sphi 0, %s15
    %p12 = scmp.ge.s32.totalorder %s11, 4
    %s21 = sphi 0, %s23
    %s24 = sphi 0, %s21
    %s25 = sphi 0, %s24
    %s41 = sphi 0, %s25
    %s45 = sphi 0, %s45
    %s47 = sphi 0, %s45
    %s48 = sphi 0, %s47
    %s62 = sphi 0, %s48
    %s66 = sphi 0, %s66
    %s68 = sphi 0, %s66
    %s69 = sphi 0, %s68
    %s83 = sphi 0, %s69
    %s89 = sphi 0, %s91
    %s92 = sphi 0, %s89
    %s93 = sphi 0, %s92
    %s109 = sphi 0, %s93
    %s113 = sphi 0, %s113
    %s115 = sphi 0, %s113
    %s116 = sphi 0, %s115
    %s130 = sphi 0, %s116
    %s136 = sphi 0, %s138
    %s139 = sphi 0, %s136
    %s140 = sphi 0, %s139
    %s156 = sphi 0, %s140
  $region4: #{_vision_embedding_forward.1} parent=0 // loop_header_branch
    %14 = sbr.rel (%p12) target = $region8
  $region5: #{_vision_embedding_forward.1} parent=0 // loop_body
    %s16 = ssub.s32 %s11, 1
    %s17 = ssub.s32 %s11, 2
    %s18 = sadd.s32 %s11, 1
    %s19 = ssub.s32 %s11, %s18
    %p20 = scmp.eq.s32.totalorder %s19, 0
    %s22 = sadd.s32 %s21, 1
    %s23 = scalar_select %p20, %s21, %s22
    %p26 = pneg %p20
    %p27 = scmp.eq.s32.totalorder %s11, 1
    %p28 = por %p26, %p27
    %p29 = scmp.ne.s32.totalorder %s21, %s24
    %p30 = scmp.eq.s32.totalorder %s11, 0
    %p31 = por %p29, %p30
    %p32 = scmp.ne.s32.totalorder %s21, %s24
    %p33 = scmp.eq.s32.totalorder %s16, 1
    %p34 = por %p32, %p33
    %p35 = scmp.ne.s32.totalorder %s24, %s25
    %p36 = scmp.eq.s32.totalorder %s16, 0
    %p37 = por %p35, %p36
    %p38 = scmp.ne.s32.totalorder %s24, %s25
    %p39 = scmp.eq.s32.totalorder %s17, 1
    %p40 = por %p38, %p39
    %p42 = scmp.ne.s32.totalorder %s25, %s41
    %p43 = scmp.eq.s32.totalorder %s17, 0
    %p44 = por %p42, %p43
    %s46 = sadd.s32 %s45, 1
    %p49 = scmp.eq.s32.totalorder %s11, 1
    %p50 = scmp.ne.s32.totalorder %s45, %s47
    %p51 = scmp.eq.s32.totalorder %s11, 0
    %p52 = por %p50, %p51
    %p53 = scmp.ne.s32.totalorder %s45, %s47
    %p54 = scmp.eq.s32.totalorder %s16, 1
    %p55 = por %p53, %p54
    %p56 = scmp.ne.s32.totalorder %s47, %s48
    %p57 = scmp.eq.s32.totalorder %s16, 0
    %p58 = por %p56, %p57
    %p59 = scmp.ne.s32.totalorder %s47, %s48
    %p60 = scmp.eq.s32.totalorder %s17, 1
    %p61 = por %p59, %p60
    %p63 = scmp.ne.s32.totalorder %s48, %s62
    %p64 = scmp.eq.s32.totalorder %s17, 0
    %p65 = por %p63, %p64
    %s67 = sadd.s32 %s66, 1
    %p70 = scmp.eq.s32.totalorder %s11, 1
    %p71 = scmp.ne.s32.totalorder %s66, %s68
    %p72 = scmp.eq.s32.totalorder %s11, 0
    %p73 = por %p71, %p72
    %p74 = scmp.ne.s32.totalorder %s66, %s68
    %p75 = scmp.eq.s32.totalorder %s16, 1
    %p76 = por %p74, %p75
    %p77 = scmp.ne.s32.totalorder %s68, %s69
    %p78 = scmp.eq.s32.totalorder %s16, 0
    %p79 = por %p77, %p78
    %p80 = scmp.ne.s32.totalorder %s68, %s69
    %p81 = scmp.eq.s32.totalorder %s17, 1
    %p82 = por %p80, %p81
    %p84 = scmp.ne.s32.totalorder %s69, %s83
    %p85 = scmp.eq.s32.totalorder %s17, 0
    %p86 = por %p84, %p85
    %s87 = ssub.s32 %s11, %s18
    %p88 = scmp.eq.s32.totalorder %s87, 0
    %s90 = sadd.s32 %s89, 1
    %s91 = scalar_select %p88, %s89, %s90
    %p94 = pneg %p88
    %p95 = scmp.eq.s32.totalorder %s11, 1
    %p96 = por %p94, %p95
    %p97 = scmp.ne.s32.totalorder %s89, %s92
    %p98 = scmp.eq.s32.totalorder %s11, 0
    %p99 = por %p97, %p98
    %p100 = scmp.ne.s32.totalorder %s89, %s92
    %p101 = scmp.eq.s32.totalorder %s16, 1
    %p102 = por %p100, %p101
    %p103 = scmp.ne.s32.totalorder %s92, %s93
    %p104 = scmp.eq.s32.totalorder %s16, 0
    %p105 = por %p103, %p104
    %p106 = scmp.ne.s32.totalorder %s92, %s93
    %p107 = scmp.eq.s32.totalorder %s17, 1
    %p108 = por %p106, %p107
    %p110 = scmp.ne.s32.totalorder %s93, %s109
    %p111 = scmp.eq.s32.totalorder %s17, 0
    %p112 = por %p110, %p111
    %s114 = sadd.s32 %s113, 1
    %p117 = scmp.eq.s32.totalorder %s11, 1
    %p118 = scmp.ne.s32.totalorder %s113, %s115
    %p119 = scmp.eq.s32.totalorder %s11, 0
    %p120 = por %p118, %p119
    %p121 = scmp.ne.s32.totalorder %s113, %s115
    %p122 = scmp.eq.s32.totalorder %s16, 1
    %p123 = por %p121, %p122
    %p124 = scmp.ne.s32.totalorder %s115, %s116
    %p125 = scmp.eq.s32.totalorder %s16, 0
    %p126 = por %p124, %p125
    %p127 = scmp.ne.s32.totalorder %s115, %s116
    %p128 = scmp.eq.s32.totalorder %s17, 1
    %p129 = por %p127, %p128
    %p131 = scmp.ne.s32.totalorder %s116, %s130
    %p132 = scmp.eq.s32.totalorder %s17, 0
    %p133 = por %p131, %p132
    %s134 = ssub.s32 %s11, %s18
    %p135 = scmp.eq.s32.totalorder %s134, 0
    %s137 = sadd.s32 %s136, 1
    %s138 = scalar_select %p135, %s136, %s137
    %p141 = pneg %p135
    %p142 = scmp.eq.s32.totalorder %s11, 1
    %p143 = por %p141, %p142
    %p144 = scmp.ne.s32.totalorder %s136, %s139
    %p145 = scmp.eq.s32.totalorder %s11, 0
    %p146 = por %p144, %p145
    %p147 = scmp.ne.s32.totalorder %s136, %s139
    %p148 = scmp.eq.s32.totalorder %s16, 1
    %p149 = por %p147, %p148
    %p150 = scmp.ne.s32.totalorder %s139, %s140
    %p151 = scmp.eq.s32.totalorder %s16, 0
    %p152 = por %p150, %p151
    %p153 = scmp.ne.s32.totalorder %s139, %s140
    %p154 = scmp.eq.s32.totalorder %s17, 1
    %p155 = por %p153, %p154
    %p157 = scmp.ne.s32.totalorder %s140, %s156
    %p158 = scmp.eq.s32.totalorder %s17, 0
    %p159 = por %p157, %p158
    %p160 = scmp.le.s32.totalorder 1, %s11
    %p161 = scmp.lt.s32.totalorder %s11, 3
    %p162 = pnand %p160, %p161
    %p163 = pneg %p162
    // Predicated region
    $region9: #{_vision_embedding_forward.1} parent=5 // pred_check
      _
    $region10: #{_vision_embedding_forward.1} parent=5 // pred_check_branch
      %165 = sbr.rel (%p162) target = $region12
    $region11: #{_vision_embedding_forward.1} parent=5 // pred_region
      %s166 = ssub.s32 %s11, 1
      // Predicated region
      $region13: #{_vision_embedding_forward.1} parent=11 // pred_check
        %p167 = pneg %p58
      $region14: #{_vision_embedding_forward.1} parent=11 // pred_check_branch
        %169 = sbr.rel (%p167) target = $region16
      $region15: #{_vision_embedding_forward.1} parent=11 // pred_region
        _
      $region16: #{_vision_embedding_forward.1} parent=11 // pred_fallthru
        _
      // Predicated region
      $region17: #{_vision_embedding_forward.1} parent=11 // pred_check
        %p170 = pneg %p79
      $region18: #{_vision_embedding_forward.1} parent=11 // pred_check_branch
        %172 = sbr.rel (%p170) target = $region20
      $region19: #{_vision_embedding_forward.1} parent=11 // pred_region
        _
      $region20: #{_vision_embedding_forward.1} parent=11 // pred_fallthru
        _
      // Predicated region
      $region21: #{_vision_embedding_forward.1} parent=11 // pred_check
        %p173 = pneg %p126
      $region22: #{_vision_embedding_forward.1} parent=11 // pred_check_branch
        %175 = sbr.rel (%p173) target = $region24
      $region23: #{_vision_embedding_forward.1} parent=11 // pred_region
        _
      $region24: #{_vision_embedding_forward.1} parent=11 // pred_fallthru
        _
    $region12: #{_vision_embedding_forward.1} parent=5 // pred_fallthru
      _
    %p176 = scmp.lt.s32.totalorder %s11, 2
    // Predicated region
    $region25: #{_vision_embedding_forward.1} parent=5 // pred_check
      %p177 = pneg %p176
    $region26: #{_vision_embedding_forward.1} parent=5 // pred_check_branch
      %179 = sbr.rel (%p177) target = $region28
    $region27: #{_vision_embedding_forward.1} parent=5 // pred_region
      // Predicated region
      $region29: #{_vision_embedding_forward.1} parent=27 // pred_check
        %p180 = pneg %p31
      $region30: #{_vision_embedding_forward.1} parent=27 // pred_check_branch
        %182 = sbr.rel (%p180) target = $region32
      $region31: #{_vision_embedding_forward.1} parent=27 // pred_region
        %s183 = smul.u32 2, %s11
        %p184 = scmp.lt.s32.totalorder %s183, 3
        %s185 = scalar_select %p184, %s183, 3
        %s186 = smul.addr %s185, 4
        %s187 = scalar_lea.vmem %s0, %s186
        %s188 = smul.u32 2, %s11
      $region32: #{_vision_embedding_forward.1} parent=27 // pred_fallthru
        _
      // Predicated region
      $region33: #{_vision_embedding_forward.1} parent=27 // pred_check
        %p189 = pneg %p99
      $region34: #{_vision_embedding_forward.1} parent=27 // pred_check_branch
        %191 = sbr.rel (%p189) target = $region36
      $region35: #{_vision_embedding_forward.1} parent=27 // pred_region
        %s192 = smul.u32 2, %s11
        %p193 = scmp.lt.s32.totalorder %s192, 3
        %s194 = scalar_select %p193, %s192, 3
        %s195 = smul.addr %s194, 8
        %s196 = scalar_lea.vmem %s3, %s195
        %s197 = smul.u32 2, %s11
      $region36: #{_vision_embedding_forward.1} parent=27 // pred_fallthru
        _
    $region28: #{_vision_embedding_forward.1} parent=5 // pred_fallthru
      _
    %p198 = scmp.le.s32.totalorder 1, %s11
    %p199 = scmp.lt.s32.totalorder %s11, 3
    %p200 = pnand %p198, %p199
    %p201 = pneg %p200
    // Predicated region
    $region37: #{_vision_embedding_forward.1} parent=5 // pred_check
      _
    $region38: #{_vision_embedding_forward.1} parent=5 // pred_check_branch
      %203 = sbr.rel (%p200) target = $region40
    $region39: #{_vision_embedding_forward.1} parent=5 // pred_region
      %s204 = ssub.s32 %s11, 1
      %s205 = smul.u32 2, %s16
      %p206 = scmp.lt.s32.totalorder %s205, 3
      %s207 = scalar_select %p206, %s205, 3
      %s208 = smul.addr %s207, 4
      %s209 = scalar_lea.vmem %s0, %s208
      %p210 = pneg %p37
      %p211 = pneg %p34
      %p212 = pneg %p58
      %p213 = pneg %p55
      %p214 = pneg %p79
      %p215 = pneg %p76
      %s216 = smul.u32 2, %s16
      %p217 = scmp.lt.s32.totalorder %s216, 3
      %s218 = scalar_select %p217, %s216, 3
      %s219 = smul.addr %s218, 8
      %s220 = scalar_lea.vmem %s3, %s219
      %p221 = pneg %p105
      %p222 = pneg %p102
      %p223 = pneg %p126
      %p224 = pneg %p123
      %p225 = pneg %p152
      %p226 = pneg %p149
      %s227 = smul.u32 2, %s16
      %p228 = scmp.lt.s32.totalorder %s227, 3
      %s229 = scalar_select %p228, %s227, 3
      %s230 = smul.addr %s229, 4
      %s231 = scalar_lea.vmem %s5, %s230
      %s232 = smul.u32 2, %s16
      %p233 = scmp.lt.s32.totalorder %s232, 3
      %s234 = scalar_select %p233, %s232, 3
      %s235 = smul.addr %s234, 4
      %s236 = scalar_lea.vmem %s0, %s235
      %s237 = smul.u32 2, %s16
      %s238 = smul.u32 2, %s16
      %p239 = scmp.lt.s32.totalorder %s238, 3
      %s240 = scalar_select %p239, %s238, 3
      %s241 = smul.addr %s240, 8
      %s242 = scalar_lea.vmem %s3, %s241
      %s243 = smul.u32 2, %s16
      %s244 = smul.u32 2, %s16
      %p245 = scmp.lt.s32.totalorder %s244, 3
      %s246 = scalar_select %p245, %s244, 3
      %s247 = smul.addr %s246, 4
      %s248 = scalar_lea.vmem %s5, %s247
      %s249 = smul.u32 2, %s16
      %v251 = vld [vmem:[%s236] sm:$0xf]
      %v252 = vld [vmem:[%s236 + $0x4] sm:$0xf]
      %v253 = vld [vmem:[%s1] sm:$0xf]
      %v254 = vld [vmem:[%s1 + $0x4] sm:$0xf]
      %v255 = vld [vmem:[%s1 + $0x8] sm:$0xf]
      %v256 = vld [vmem:[%s1 + $0xc] sm:$0xf]
      %v257 = vld [vmem:[%s1 + $0x10] sm:$0xf]
      %v258 = vld [vmem:[%s1 + $0x14] sm:$0xf]
      %v259 = vld [vmem:[%s1 + $0x18] sm:$0xf]
      %v260 = vld [vmem:[%s1 + $0x1c] sm:$0xf]
      %v261 = vld [vmem:[%s2] sm:$0x1]
      %v263 = vlaneseq
      %v264 = vshrl.u32 %v263, 7
      %v265 = vsub.s32 0, %v264
      %v266 = vrot.slane %v261, %v265
      %v270 = vunpack.c.l.b16 %v251
      %v271 = vunpack.c.l.b16 %v252
      %v272 = vpack.c.b16 %v271, %v270
      %v281 = vunpack.c.l.b16 %v253
      %v282 = vunpack.c.l.b16 %v254
      %v283 = vunpack.c.l.b16 %v255
      %v284 = vunpack.c.l.b16 %v256
      %v285 = vunpack.c.l.b16 %v257
      %v286 = vunpack.c.l.b16 %v258
      %v287 = vunpack.c.l.b16 %v259
      %v288 = vunpack.c.l.b16 %v260
      %v289 = vpack.c.b16 %v282, %v281
      %v290 = vpack.c.b16 %v284, %v283
      %v291 = vpack.c.b16 %v286, %v285
      %v292 = vpack.c.b16 %v288, %v287
      %vm297 = vcmask 523264
      %v299 = vsel %vm297, %v272, 0
      %301 = vmatprep.subr.bf16.mxu0 0
      %302 = vmatpush1.bf16.msra.mxu0 %v289
      %303 = vmatprep.subr.bf16.mxu0 0
      %304 = vmatpush1.bf16.msra.mxu0 %v290
      %305 = vmatprep.subr.bf16.mxu0 0
      %306 = vmatpush1.bf16.msra.mxu0 %v291
      %307 = vmatprep.subr.bf16.mxu0 0
      %308 = vmatpush1.bf16.msra.mxu0 %v292
      %309 = vmatprep.subr.bf16.mxu0 0
      %310 = vmatpush1.bf16.msra.mxu0 0
      %311 = vmatprep.subr.bf16.mxu0 0
      %312 = vmatpush1.bf16.msra.mxu0 0
      %313 = vmatprep.subr.bf16.mxu0 0
      %314 = vmatpush1.bf16.msra.mxu0 0
      %315 = vmatprep.subr.bf16.mxu0 0
      %316 = vmatpush1.bf16.msra.mxu0 0
      %317 = vmatprep.subr.bf16.mxu0 0
      %318 = vmatpush1.bf16.msra.mxu0 0
      %319 = vmatprep.subr.bf16.mxu0 0
      %320 = vmatpush1.bf16.msra.mxu0 0
      %321 = vmatprep.subr.bf16.mxu0 0
      %322 = vmatpush1.bf16.msra.mxu0 0
      %323 = vmatprep.subr.bf16.mxu0 0
      %324 = vmatpush1.bf16.msra.mxu0 0
      %325 = vmatprep.subr.bf16.mxu0 0
      %326 = vmatpush1.bf16.msra.mxu0 0
      %327 = vmatprep.subr.bf16.mxu0 0
      %328 = vmatpush1.bf16.msra.mxu0 0
      %329 = vmatprep.subr.bf16.mxu0 0
      %330 = vmatpush1.bf16.msra.mxu0 0
      %331 = vmatprep.subr.bf16.mxu0 0
      %332 = vmatpush1.bf16.msra.mxu0 0
      %333 = vmatprep.mubr.bf16.mxu0 0
      %334 = vmatmul.mubr.bf16.gmra.mrb[0].mxu0 %v299
      %v335 = vpop.f32.mrb[0].mxu0
      %v336 = vadd.f32 %v266, %v335
      %v337 = vpop.f32.mrb[0].mxu0
      %v338 = vpop.f32.mrb[0].mxu0
      %v339 = vadd.f32 %v266, %v338
      %v340 = vpop.f32.mrb[0].mxu0
      %341 = vdwg.mxu0
      %v342 = vld [vmem:[%s242] sm:$0xff]
      %v343 = vld [vmem:[%s242 + $0x8] sm:$0xff]
      %v344 = vld [vmem:[%s4] sm:$0x1]
      %v346 = vlaneseq
      %v347 = vshrl.u32 %v346, 7
      %v348 = vsub.s32 0, %v347
      %v349 = vrot.slane %v344, %v348
      %v351 = vsub.f32 %v349, %v336
      %v352 = vsub.f32 %v349, %v339
      %354 = vset.pattern.permute.xlu0 0
      %355 = vperm.xlu0 %354, %v342
      %v356 = vpop.permute.xlu0 %355
      %359 = vset.pattern.permute.xlu0 0
      %360 = vperm.xlu0 %359, %v343
      %v361 = vpop.permute.xlu0 %360
      %v363 = vmul.f32 %v356, %v351
      %v364 = vmul.f32 %v361, %v352
      %v365 = vadd.f32 %v336, %v363
      %v366 = vadd.f32 %v339, %v364
      %v367 = vpack.c.bf16 %v366, %v365
      %v369 = vunpack.c.l.b16 %v367
      %v370 = vunpack.c.h.b16 %v367
      %v371 = vpack.c.b16 %v369, %v369
      %v372 = vpack.c.b16 %v370, %v370
      %vm375 = vcmask 257024
      %376 = vst.msk [vmem:[%s248] sm:$0xf] %vm375, %v371
      %377 = vst.msk [vmem:[%s248 + $0x4] sm:$0xf] %vm375, %v372
      %s378 = smul.u32 2, %s16
      %p379 = scmp.lt.s32.totalorder %s378, 3
      %s380 = scalar_select %p379, %s378, 3
      %s381 = smul.addr %s380, 4
      %s382 = scalar_lea.vmem %s5, %s381
      // Predicated region
      $region41: #{_vision_embedding_forward.1} parent=39 // pred_check
        %p383 = pneg %p149
      $region42: #{_vision_embedding_forward.1} parent=39 // pred_check_branch
        %385 = sbr.rel (%p383) target = $region44
      $region43: #{_vision_embedding_forward.1} parent=39 // pred_region
        %s386 = smul.u32 2, %s16
      $region44: #{_vision_embedding_forward.1} parent=39 // pred_fallthru
        _
    $region40: #{_vision_embedding_forward.1} parent=5 // pred_fallthru
      _
    %p387 = scmp.le.s32.totalorder 2, %s11
    // Predicated region
    $region45: #{_vision_embedding_forward.1} parent=5 // pred_check
      %p388 = pneg %p387
    $region46: #{_vision_embedding_forward.1} parent=5 // pred_check_branch
      %390 = sbr.rel (%p388) target = $region48
    $region47: #{_vision_embedding_forward.1} parent=5 // pred_region
      %s391 = ssub.s32 %s11, 2
      // Predicated region
      $region49: #{_vision_embedding_forward.1} parent=47 // pred_check
        %p392 = pneg %p155
      $region50: #{_vision_embedding_forward.1} parent=47 // pred_check_branch
        %394 = sbr.rel (%p392) target = $region52
      $region51: #{_vision_embedding_forward.1} parent=47 // pred_region
        %s395 = smul.u32 2, %s17
        %p396 = scmp.lt.s32.totalorder %s395, 3
        %s397 = scalar_select %p396, %s395, 3
        %s398 = smul.addr %s397, 4
        %s399 = scalar_lea.vmem %s5, %s398
      $region52: #{_vision_embedding_forward.1} parent=47 // pred_fallthru
        _
    $region48: #{_vision_embedding_forward.1} parent=5 // pred_fallthru
      _
  $region6: #{_vision_embedding_forward.1} parent=0 // loop_footer
    %s15 = sadd.s32 1, %s11
  $region7: #{_vision_embedding_forward.1} parent=0 // loop_footer_branch
    %10 = sbr.rel target = $region3
  $region8: #{_vision_embedding_forward.1} parent=0 // loop_exit
    _

</llo_original>
